<compile_context>
chip_gen: v6e
topology: v6e:2x2x1
jax: 0.10.0
libtpu: 0.0.40
codegen_flags: <defaults>
</compile_context>

<pallas_src>
from functools import partial

import jax
import jax.numpy as jnp
from jax.experimental import pallas as pl
from jax.experimental.pallas import tpu as pltpu

NUM_DIM_X = 4          # num_dim_x for the CAR model
NUM_DIM_CONTROL = 2    # num_dim_control for the CAR model
EFF_START, EFF_END = 2, 4   # effective_dim_start / effective_dim_end
HIDDEN = 32            # hidden width of model_W / model_Wbot MLPs
W_LB = 0.1             # w_lb


def w_func_kernel(x_ref, w1t_ref, b1t_ref, w2r_ref, wbot_ref, tl_ref, out_ref,
                  *, n, m, w_lb):
    """One batch tile, feature-major (batch-on-lanes) layout.

    x_ref    : (2, TB)     effective state slice, batch on lanes      (VMEM)
    w1t_ref  : (H, 2)      first-layer weight, transposed             (VMEM)
    b1t_ref  : (H, 1)      first-layer bias column                    (VMEM)
    w2r_ref  : (n*m, H)    second-layer weight rows for the columns
                           j >= n-m of W, row order r = i*m + (j-(n-m)) (VMEM)
    wbot_ref : (k*k,)      constant Wbot block, flat index i*k + j    (SMEM)
    tl_ref   : (k*k,)      constant top-left Gram block (incl. w_lb on
                           its diagonal), flat index j*k + kk         (SMEM)
    out_ref  : (n*n, TB)   W^T W + w_lb*I, flat position q = j*n + kk
    """
    k = n - m
    tb = out_ref.shape[1]

    x = x_ref[...]                                   # (2, TB)
    w1t = w1t_ref[...]                               # (H, 2)

    # ---- layer 1 (K=2): two lane-dense VPU FMAs + tanh on the EUP ----
    h = jnp.tanh(w1t[:, 0:1] * x[0:1, :]
                 + w1t[:, 1:2] * x[1:2, :]
                 + b1t_ref[...])                     # (H, TB)

    # ---- layer 2 (MXU): only the batch-dependent columns j >= k of W ----
    wr = jnp.dot(w2r_ref[...], h, preferred_element_type=jnp.float32)  # (n*m, TB)

    def w_col(i, j):                                 # W[:, i, j] for j >= k
        r = i * m + (j - k)
        return wr[r:r + 1, :]

    # ---- Gram: out[j, kk] = sum_i W[i, j] * W[i, kk] (+ w_lb on the diag) ----
    # Only the upper triangle is computed; structural zeros are skipped.
    upper = {}
    for j in range(n):
        for kk in range(j, n):
            if kk < k:
                # both columns constant -> fully precomputed in the wrapper
                row = jnp.full((1, tb), tl_ref[j * k + kk], dtype=jnp.float32)
            elif j < k:
                # cross block: constant Wbot coefficients, i >= k terms vanish
                row = wbot_ref[j] * w_col(0, kk)
                for i in range(1, k):
                    row = row + wbot_ref[i * k + j] * w_col(i, kk)
            else:
                # fully batch-dependent block
                row = w_col(0, j) * w_col(0, kk)
                for i in range(1, n):
                    row = row + w_col(i, j) * w_col(i, kk)
                if j == kk:
                    row = row + jnp.float32(w_lb)
            upper[(j, kk)] = row

    rows = [upper[(min(j, kk), max(j, kk))]
            for j in range(n) for kk in range(n)]
    out_ref[...] = jnp.concatenate(rows, axis=0)     # single lane-dense store


def w_func(x, params, *, n=NUM_DIM_X, m=NUM_DIM_CONTROL, w_lb=W_LB, tb=1024):
    """x: (bs, num_dim_x, 1) float32, like the torch forward input.

    tb: batch tile (lane) size — multiple of 128; large tiles amortize the
        per-grid-step overhead (footprint is tiny either way).
    """
    bs = x.shape[0]
    k = n - m
    w1, b1, w2, wb1, bb1, wb2 = params
    hidden = w1.shape[1]

    # ---- batch-independent precompute (hoisted out of the kernel) ----
    # model_Wbot applied to ones(bs, 1) is the same row for every batch elem.
    wbot = (jnp.tanh(wb1 + bb1) @ wb2).reshape(k, k)                 # Wbot[i, j]
    wbot_col = wbot.reshape(k * k)                                   # flat i*k+j
    gram_tl = (wbot.T @ wbot
               + w_lb * jnp.eye(k, dtype=jnp.float32)).reshape(k * k)

    # Second-layer weight rows for the batch-dependent columns j >= k of W,
    # ordered r = i*m + (j - k).
    sel = jnp.array([i * n + j for i in range(n) for j in range(k, n)],
                    dtype=jnp.int32)
    w2r = jnp.take(w2.T, sel, axis=0)                                # (n*m, H)
    w1t = w1.T                                                       # (H, 2)
    b1t = b1.T                                                       # (H, 1)

    # ---- batch-major -> lane-major (batch on the 128-lane axis) ----
    x_eff_t = x[..., 0][:, EFF_START:EFF_END].T                      # (2, bs)
    num_tiles = pl.cdiv(bs, tb)
    bs_pad = num_tiles * tb
    if bs_pad != bs:
        x_eff_t = jnp.pad(x_eff_t, ((0, 0), (0, bs_pad - bs)))

    kernel = partial(w_func_kernel, n=n, m=m, w_lb=w_lb)
    out_t = pl.pallas_call(
        kernel,
        out_shape=jax.ShapeDtypeStruct((n * n, bs_pad), jnp.float32),
        grid=(num_tiles,),
        in_specs=[
            pl.BlockSpec((2, tb), lambda i: (0, i)),            # x_eff (tiled)
            pl.BlockSpec((hidden, 2), lambda i: (0, 0)),        # w1^T (resident)
            pl.BlockSpec((hidden, 1), lambda i: (0, 0)),        # b1^T (resident)
            pl.BlockSpec((n * m, hidden), lambda i: (0, 0)),    # reduced w2^T
            pl.BlockSpec(memory_space=pltpu.MemorySpace.SMEM),  # Wbot scalars
            pl.BlockSpec(memory_space=pltpu.MemorySpace.SMEM),  # const Gram blk
        ],
        out_specs=pl.BlockSpec((n * n, tb), lambda i: (0, i)),
        compiler_params=pltpu.CompilerParams(
            dimension_semantics=("parallel",)),
    )(x_eff_t, w1t, b1t, w2r, wbot_col, gram_tl)

    return out_t[:, :bs].T.reshape(bs, n, n)


def init_params(key, n=NUM_DIM_X, m=NUM_DIM_CONTROL, hidden=HIDDEN):
    """Deterministic synthetic parameters (shapes match the torch MLPs)."""
    ks = jax.random.split(key, 6)
    w1 = 0.5 * jax.random.normal(ks[0], (EFF_END - EFF_START, hidden), jnp.float32)
    b1 = 0.1 * jax.random.normal(ks[1], (1, hidden), jnp.float32)
    w2 = 0.3 * jax.random.normal(ks[2], (hidden, n * n), jnp.float32)
    wb1 = 0.5 * jax.random.normal(ks[3], (1, hidden), jnp.float32)
    bb1 = 0.1 * jax.random.normal(ks[4], (1, hidden), jnp.float32)
    wb2 = 0.3 * jax.random.normal(ks[5], (hidden, (n - m) * (n - m)), jnp.float32)
    return (w1, b1, w2, wb1, bb1, wb2)


def w_func_ref(x, params, n=NUM_DIM_X, m=NUM_DIM_CONTROL, w_lb=W_LB):
    """Plain-JAX reference mirroring the torch forward exactly."""
    w1, b1, w2, wb1, bb1, wb2 = params
    bs = x.shape[0]
    x2 = x[..., 0]
    W = (jnp.tanh(x2[:, EFF_START:EFF_END] @ w1 + b1) @ w2).reshape(bs, n, n)
    Wbot = (jnp.tanh(jnp.ones((bs, 1), jnp.float32) @ wb1 + bb1) @ wb2
            ).reshape(bs, n - m, n - m)
    W = W.at[:, : n - m, : n - m].set(Wbot)
    W = W.at[:, n - m:, : n - m].set(0.0)
    W = jnp.swapaxes(W, 1, 2) @ W
    return W + w_lb * jnp.eye(n, dtype=jnp.float32)


# TODO(synk): convert_to_hardtanh / set_mixing are training-time module
# mutations (no forward-pass semantics) and are not translated.

if __name__ == "__main__":
    key = jax.random.PRNGKey(0)
    kx, kp = jax.random.split(key)
    bs = 300                       # not a multiple of the tile: exercises padding
    x = jax.random.normal(kx, (bs, NUM_DIM_X, 1), jnp.float32)
    params = init_params(kp)

    out = jax.block_until_ready(w_func(x, params, tb=128))   # 3 grid steps
    ref = w_func_ref(x, params)

    assert out.shape == (bs, NUM_DIM_X, NUM_DIM_X)
    assert jnp.allclose(out, ref, atol=1e-3, rtol=1e-3)
    print("KERNEL_OK")
</pallas_src>

<mosaic_0001>
module attributes {stable_mosaic.version = 11 : i64} {
  func.func @w_func_kernel(%arg0: i32, %arg1: memref<2x128xf32, #tpu.memory_space<vmem>>, %arg2: memref<32x2xf32, #tpu.memory_space<vmem>>, %arg3: memref<32x1xf32, #tpu.memory_space<vmem>>, %arg4: memref<8x32xf32, #tpu.memory_space<vmem>>, %arg5: memref<4xf32, #tpu.memory_space<smem>>, %arg6: memref<4xf32, #tpu.memory_space<smem>>, %arg7: memref<16x128xf32, #tpu.memory_space<vmem>>) attributes {dimension_semantics = [#tpu.dimension_semantics<parallel>], iteration_bounds = array<i64: 3>, scalar_prefetch = 0 : i64, scratch_operands = 0 : i64, tpu.core_type = #tpu.core_type<tc>, window_params = [{transform_indices = @transform_0, window_bounds = array<i64: 2, 128>}, {pipeline_mode = #tpu.pipeline_mode<synchronous>, transform_indices = @transform_1, window_bounds = array<i64: 32, 2>}, {pipeline_mode = #tpu.pipeline_mode<synchronous>, transform_indices = @transform_2, window_bounds = array<i64: 32, 1>}, {pipeline_mode = #tpu.pipeline_mode<synchronous>, transform_indices = @transform_3, window_bounds = array<i64: 8, 32>}, {transform_indices = @transform_4, window_bounds = array<i64: 4>}, {transform_indices = @transform_5, window_bounds = array<i64: 4>}, {transform_indices = @transform_6, window_bounds = array<i64: 16, 128>}]} {
    %c0 = arith.constant 0 : index
    %c0_0 = arith.constant 0 : index
    %0 = vector.load %arg1[%c0, %c0_0] : memref<2x128xf32, #tpu.memory_space<vmem>>, vector<2x128xf32>
    %c0_1 = arith.constant 0 : index
    %c0_2 = arith.constant 0 : index
    %1 = vector.load %arg2[%c0_1, %c0_2] : memref<32x2xf32, #tpu.memory_space<vmem>>, vector<32x2xf32>
    %2 = vector.extract_strided_slice %1 {offsets = [0, 0], sizes = [32, 1], strides = [1, 1]} : vector<32x2xf32> to vector<32x1xf32>
    %3 = vector.extract_strided_slice %0 {offsets = [0, 0], sizes = [1, 128], strides = [1, 1]} : vector<2x128xf32> to vector<1x128xf32>
    %4 = vector.broadcast %2 : vector<32x1xf32> to vector<32x128xf32>
    %5 = vector.broadcast %3 : vector<1x128xf32> to vector<32x128xf32>
    %6 = arith.mulf %4, %5 : vector<32x128xf32>
    %7 = vector.extract_strided_slice %1 {offsets = [0, 1], sizes = [32, 1], strides = [1, 1]} : vector<32x2xf32> to vector<32x1xf32>
    %8 = vector.extract_strided_slice %0 {offsets = [1, 0], sizes = [1, 128], strides = [1, 1]} : vector<2x128xf32> to vector<1x128xf32>
    %9 = vector.broadcast %7 : vector<32x1xf32> to vector<32x128xf32>
    %10 = vector.broadcast %8 : vector<1x128xf32> to vector<32x128xf32>
    %11 = arith.mulf %9, %10 : vector<32x128xf32>
    %12 = arith.addf %6, %11 : vector<32x128xf32>
    %c0_3 = arith.constant 0 : index
    %c0_4 = arith.constant 0 : index
    %13 = vector.load %arg3[%c0_3, %c0_4] : memref<32x1xf32, #tpu.memory_space<vmem>>, vector<32x1xf32>
    %14 = vector.broadcast %13 : vector<32x1xf32> to vector<32x128xf32>
    %15 = arith.addf %12, %14 : vector<32x128xf32>
    %16 = math.tanh %15 : vector<32x128xf32>
    %c0_5 = arith.constant 0 : index
    %c0_6 = arith.constant 0 : index
    %17 = vector.load %arg4[%c0_5, %c0_6] : memref<8x32xf32, #tpu.memory_space<vmem>>, vector<8x32xf32>
    %cst = arith.constant dense<0.000000e+00> : vector<8x128xf32>
    %18 = tpu.matmul %17, %16, %cst {dimension_numbers = #tpu.dot_dimension_numbers<[1], [0], [0], [1], [0, 0, 1, 1], [], []>} : vector<8x32xf32>, vector<32x128xf32>, vector<8x128xf32> -> vector<8x128xf32>
    %c0_7 = arith.constant 0 : index
    %19 = memref.load %arg6[%c0_7] : memref<4xf32, #tpu.memory_space<smem>>
    %20 = vector.broadcast %19 : f32 to vector<1x128xf32>
    %c1 = arith.constant 1 : index
    %21 = memref.load %arg6[%c1] : memref<4xf32, #tpu.memory_space<smem>>
    %22 = vector.broadcast %21 : f32 to vector<1x128xf32>
    %c0_8 = arith.constant 0 : index
    %23 = memref.load %arg5[%c0_8] : memref<4xf32, #tpu.memory_space<smem>>
    %24 = vector.extract_strided_slice %18 {offsets = [0, 0], sizes = [1, 128], strides = [1, 1]} : vector<8x128xf32> to vector<1x128xf32>
    %25 = vector.broadcast %23 : f32 to vector<1x128xf32>
    %26 = arith.mulf %25, %24 : vector<1x128xf32>
    %c2 = arith.constant 2 : index
    %27 = memref.load %arg5[%c2] : memref<4xf32, #tpu.memory_space<smem>>
    %28 = vector.extract_strided_slice %18 {offsets = [2, 0], sizes = [1, 128], strides = [1, 1]} : vector<8x128xf32> to vector<1x128xf32>
    %29 = vector.broadcast %27 : f32 to vector<1x128xf32>
    %30 = arith.mulf %29, %28 : vector<1x128xf32>
    %31 = arith.addf %26, %30 : vector<1x128xf32>
    %c0_9 = arith.constant 0 : index
    %32 = memref.load %arg5[%c0_9] : memref<4xf32, #tpu.memory_space<smem>>
    %33 = vector.extract_strided_slice %18 {offsets = [1, 0], sizes = [1, 128], strides = [1, 1]} : vector<8x128xf32> to vector<1x128xf32>
    %34 = vector.broadcast %32 : f32 to vector<1x128xf32>
    %35 = arith.mulf %34, %33 : vector<1x128xf32>
    %c2_10 = arith.constant 2 : index
    %36 = memref.load %arg5[%c2_10] : memref<4xf32, #tpu.memory_space<smem>>
    %37 = vector.extract_strided_slice %18 {offsets = [3, 0], sizes = [1, 128], strides = [1, 1]} : vector<8x128xf32> to vector<1x128xf32>
    %38 = vector.broadcast %36 : f32 to vector<1x128xf32>
    %39 = arith.mulf %38, %37 : vector<1x128xf32>
    %40 = arith.addf %35, %39 : vector<1x128xf32>
    %c3 = arith.constant 3 : index
    %41 = memref.load %arg6[%c3] : memref<4xf32, #tpu.memory_space<smem>>
    %42 = vector.broadcast %41 : f32 to vector<1x128xf32>
    %c1_11 = arith.constant 1 : index
    %43 = memref.load %arg5[%c1_11] : memref<4xf32, #tpu.memory_space<smem>>
    %44 = vector.extract_strided_slice %18 {offsets = [0, 0], sizes = [1, 128], strides = [1, 1]} : vector<8x128xf32> to vector<1x128xf32>
    %45 = vector.broadcast %43 : f32 to vector<1x128xf32>
    %46 = arith.mulf %45, %44 : vector<1x128xf32>
    %c3_12 = arith.constant 3 : index
    %47 = memref.load %arg5[%c3_12] : memref<4xf32, #tpu.memory_space<smem>>
    %48 = vector.extract_strided_slice %18 {offsets = [2, 0], sizes = [1, 128], strides = [1, 1]} : vector<8x128xf32> to vector<1x128xf32>
    %49 = vector.broadcast %47 : f32 to vector<1x128xf32>
    %50 = arith.mulf %49, %48 : vector<1x128xf32>
    %51 = arith.addf %46, %50 : vector<1x128xf32>
    %c1_13 = arith.constant 1 : index
    %52 = memref.load %arg5[%c1_13] : memref<4xf32, #tpu.memory_space<smem>>
    %53 = vector.extract_strided_slice %18 {offsets = [1, 0], sizes = [1, 128], strides = [1, 1]} : vector<8x128xf32> to vector<1x128xf32>
    %54 = vector.broadcast %52 : f32 to vector<1x128xf32>
    %55 = arith.mulf %54, %53 : vector<1x128xf32>
    %c3_14 = arith.constant 3 : index
    %56 = memref.load %arg5[%c3_14] : memref<4xf32, #tpu.memory_space<smem>>
    %57 = vector.extract_strided_slice %18 {offsets = [3, 0], sizes = [1, 128], strides = [1, 1]} : vector<8x128xf32> to vector<1x128xf32>
    %58 = vector.broadcast %56 : f32 to vector<1x128xf32>
    %59 = arith.mulf %58, %57 : vector<1x128xf32>
    %60 = arith.addf %55, %59 : vector<1x128xf32>
    %61 = vector.extract_strided_slice %18 {offsets = [0, 0], sizes = [1, 128], strides = [1, 1]} : vector<8x128xf32> to vector<1x128xf32>
    %62 = vector.extract_strided_slice %18 {offsets = [0, 0], sizes = [1, 128], strides = [1, 1]} : vector<8x128xf32> to vector<1x128xf32>
    %63 = arith.mulf %61, %62 : vector<1x128xf32>
    %64 = vector.extract_strided_slice %18 {offsets = [2, 0], sizes = [1, 128], strides = [1, 1]} : vector<8x128xf32> to vector<1x128xf32>
    %65 = vector.extract_strided_slice %18 {offsets = [2, 0], sizes = [1, 128], strides = [1, 1]} : vector<8x128xf32> to vector<1x128xf32>
    %66 = arith.mulf %64, %65 : vector<1x128xf32>
    %67 = arith.addf %63, %66 : vector<1x128xf32>
    %68 = vector.extract_strided_slice %18 {offsets = [4, 0], sizes = [1, 128], strides = [1, 1]} : vector<8x128xf32> to vector<1x128xf32>
    %69 = vector.extract_strided_slice %18 {offsets = [4, 0], sizes = [1, 128], strides = [1, 1]} : vector<8x128xf32> to vector<1x128xf32>
    %70 = arith.mulf %68, %69 : vector<1x128xf32>
    %71 = arith.addf %67, %70 : vector<1x128xf32>
    %72 = vector.extract_strided_slice %18 {offsets = [6, 0], sizes = [1, 128], strides = [1, 1]} : vector<8x128xf32> to vector<1x128xf32>
    %73 = vector.extract_strided_slice %18 {offsets = [6, 0], sizes = [1, 128], strides = [1, 1]} : vector<8x128xf32> to vector<1x128xf32>
    %74 = arith.mulf %72, %73 : vector<1x128xf32>
    %75 = arith.addf %71, %74 : vector<1x128xf32>
    %cst_15 = arith.constant 1.000000e-01 : f32
    %76 = vector.broadcast %cst_15 : f32 to vector<1x128xf32>
    %77 = arith.addf %75, %76 : vector<1x128xf32>
    %78 = vector.extract_strided_slice %18 {offsets = [0, 0], sizes = [1, 128], strides = [1, 1]} : vector<8x128xf32> to vector<1x128xf32>
    %79 = vector.extract_strided_slice %18 {offsets = [1, 0], sizes = [1, 128], strides = [1, 1]} : vector<8x128xf32> to vector<1x128xf32>
    %80 = arith.mulf %78, %79 : vector<1x128xf32>
    %81 = vector.extract_strided_slice %18 {offsets = [2, 0], sizes = [1, 128], strides = [1, 1]} : vector<8x128xf32> to vector<1x128xf32>
    %82 = vector.extract_strided_slice %18 {offsets = [3, 0], sizes = [1, 128], strides = [1, 1]} : vector<8x128xf32> to vector<1x128xf32>
    %83 = arith.mulf %81, %82 : vector<1x128xf32>
    %84 = arith.addf %80, %83 : vector<1x128xf32>
    %85 = vector.extract_strided_slice %18 {offsets = [4, 0], sizes = [1, 128], strides = [1, 1]} : vector<8x128xf32> to vector<1x128xf32>
    %86 = vector.extract_strided_slice %18 {offsets = [5, 0], sizes = [1, 128], strides = [1, 1]} : vector<8x128xf32> to vector<1x128xf32>
    %87 = arith.mulf %85, %86 : vector<1x128xf32>
    %88 = arith.addf %84, %87 : vector<1x128xf32>
    %89 = vector.extract_strided_slice %18 {offsets = [6, 0], sizes = [1, 128], strides = [1, 1]} : vector<8x128xf32> to vector<1x128xf32>
    %90 = vector.extract_strided_slice %18 {offsets = [7, 0], sizes = [1, 128], strides = [1, 1]} : vector<8x128xf32> to vector<1x128xf32>
    %91 = arith.mulf %89, %90 : vector<1x128xf32>
    %92 = arith.addf %88, %91 : vector<1x128xf32>
    %93 = vector.extract_strided_slice %18 {offsets = [1, 0], sizes = [1, 128], strides = [1, 1]} : vector<8x128xf32> to vector<1x128xf32>
    %94 = vector.extract_strided_slice %18 {offsets = [1, 0], sizes = [1, 128], strides = [1, 1]} : vector<8x128xf32> to vector<1x128xf32>
    %95 = arith.mulf %93, %94 : vector<1x128xf32>
    %96 = vector.extract_strided_slice %18 {offsets = [3, 0], sizes = [1, 128], strides = [1, 1]} : vector<8x128xf32> to vector<1x128xf32>
    %97 = vector.extract_strided_slice %18 {offsets = [3, 0], sizes = [1, 128], strides = [1, 1]} : vector<8x128xf32> to vector<1x128xf32>
    %98 = arith.mulf %96, %97 : vector<1x128xf32>
    %99 = arith.addf %95, %98 : vector<1x128xf32>
    %100 = vector.extract_strided_slice %18 {offsets = [5, 0], sizes = [1, 128], strides = [1, 1]} : vector<8x128xf32> to vector<1x128xf32>
    %101 = vector.extract_strided_slice %18 {offsets = [5, 0], sizes = [1, 128], strides = [1, 1]} : vector<8x128xf32> to vector<1x128xf32>
    %102 = arith.mulf %100, %101 : vector<1x128xf32>
    %103 = arith.addf %99, %102 : vector<1x128xf32>
    %104 = vector.extract_strided_slice %18 {offsets = [7, 0], sizes = [1, 128], strides = [1, 1]} : vector<8x128xf32> to vector<1x128xf32>
    %105 = vector.extract_strided_slice %18 {offsets = [7, 0], sizes = [1, 128], strides = [1, 1]} : vector<8x128xf32> to vector<1x128xf32>
    %106 = arith.mulf %104, %105 : vector<1x128xf32>
    %107 = arith.addf %103, %106 : vector<1x128xf32>
    %cst_16 = arith.constant 1.000000e-01 : f32
    %108 = vector.broadcast %cst_16 : f32 to vector<1x128xf32>
    %109 = arith.addf %107, %108 : vector<1x128xf32>
    %110 = tpu.concatenate %20, %22, %31, %40, %22, %42, %51, %60, %31, %51, %77, %92, %40, %60, %92, %109 in 0 : vector<1x128xf32>, vector<1x128xf32>, vector<1x128xf32>, vector<1x128xf32>, vector<1x128xf32>, vector<1x128xf32>, vector<1x128xf32>, vector<1x128xf32>, vector<1x128xf32>, vector<1x128xf32>, vector<1x128xf32>, vector<1x128xf32>, vector<1x128xf32>, vector<1x128xf32>, vector<1x128xf32>, vector<1x128xf32> -> vector<16x128xf32>
    %c0_17 = arith.constant 0 : index
    %c0_18 = arith.constant 0 : index
    %111 = vector.load %arg7[%c0_17, %c0_18] : memref<16x128xf32, #tpu.memory_space<vmem>>, vector<16x128xf32>
    tpu.vector_store %arg7[%c0_17, %c0_18], %110 {strides = array<i32>} : memref<16x128xf32, #tpu.memory_space<vmem>>, vector<16x128xf32>,
    return
  }
  func.func @transform_0(%arg0: i32) -> (i32, i32) {
    %c0_i32 = arith.constant 0 : i32
    %c0_i32_0 = arith.constant 0 : i32
    return %c0_i32, %arg0 : i32, i32
  }
  func.func @transform_1(%arg0: i32) -> (i32, i32) {
    %c0_i32 = arith.constant 0 : i32
    %c0_i32_0 = arith.constant 0 : i32
    %c0_i32_1 = arith.constant 0 : i32
    return %c0_i32, %c0_i32_0 : i32, i32
  }
  func.func @transform_2(%arg0: i32) -> (i32, i32) {
    %c0_i32 = arith.constant 0 : i32
    %c0_i32_0 = arith.constant 0 : i32
    %c0_i32_1 = arith.constant 0 : i32
    return %c0_i32, %c0_i32_0 : i32, i32
  }
  func.func @transform_3(%arg0: i32) -> (i32, i32) {
    %c0_i32 = arith.constant 0 : i32
    %c0_i32_0 = arith.constant 0 : i32
    %c0_i32_1 = arith.constant 0 : i32
    return %c0_i32, %c0_i32_0 : i32, i32
  }
  func.func @transform_4(%arg0: i32) -> i32 {
    %c0_i32 = arith.constant 0 : i32
    %c0_i32_0 = arith.constant 0 : i32
    return %c0_i32 : i32
  }
  func.func @transform_5(%arg0: i32) -> i32 {
    %c0_i32 = arith.constant 0 : i32
    %c0_i32_0 = arith.constant 0 : i32
    return %c0_i32 : i32
  }
  func.func @transform_6(%arg0: i32) -> (i32, i32) {
    %c0_i32 = arith.constant 0 : i32
    %c0_i32_0 = arith.constant 0 : i32
    return %c0_i32, %arg0 : i32, i32
  }
}

</mosaic_0001>

<llo_original>
// kernel: tpu_custom_call.1
$region0: #{tpu_custom_call.1}
  #allocation0 [shape = 'u32[]', space=smem, size = 0x4, offset = 0x4, fixed_abs, tag = 'smem constant byte address 0x4 - core index']
  #allocation1 [shape = 'u32[144,128]{1,0:T(1,128)}', space=vmem, size = 0x12000, scoped, tag = 'internal scratch']
  %s0 = inlined_call_operand.vmem [shape: f32[2,384], index: 0, kind: input, shape index: {}]
  %s1 = inlined_call_operand.vmem [shape: f32[32,2], index: 1, kind: input, shape index: {}]
  %s2 = inlined_call_operand.vmem [shape: f32[32,1], index: 2, kind: input, shape index: {}]
  %s3 = inlined_call_operand.vmem [shape: f32[8,32], index: 3, kind: input, shape index: {}]
  %s4 = inlined_call_operand.vmem [shape: f32[4], index: 4, kind: input, shape index: {}]
  %s5 = inlined_call_operand.vmem [shape: f32[4], index: 5, kind: input, shape index: {}]
  %s6 = inlined_call_operand.hbm [shape: f32[16,384], index: 6, kind: output, shape index: {}]
  %s7 = sld [smem:[#allocation0]]
  $region65: #{tpu_custom_call.1} parent=0
    _
  %s9 = ssub.s32 1, %s7
  %s10 = scalar_select 0, %s9, %s7
  $region1: #{tpu_custom_call.1} parent=0
    #allocation2 [shape = 'u8[512]{0}', space=smem, size = 0x200, scoped, tag = 'input window, operand 4, single buffered']
    #allocation3 [shape = 's32[2]{0}', space=sflag, size = 0x8, scoped, tag = 'scoped memory for tpu_custom_call.1']
    #allocation4 [shape = 's32[2]{0}', space=sflag, size = 0x8, scoped, tag = 'scoped memory for tpu_custom_call.1']
    #allocation5 [shape = 'u8[512]{0}', space=smem, size = 0x200, scoped, tag = 'input window, operand 5, single buffered']
    #allocation6 [shape = 's32[1]{0}', space=sflag, size = 0x4, scoped, tag = 'scoped memory for tpu_custom_call.1']
    #allocation7 [shape = 'u8[16384]{0}', space=vmem, size = 0x4000, scoped, tag = 'output window, operand 0']
    %11 = vsyncpa [#allocation4], 0
    %12 = vsyncpa [#allocation6], 0
    %13 = vsyncpa [#allocation3], 0
    %s14 = scalar_lea.sflag [#allocation3], 1
    %15 = vsyncpa %s14, 0
    loop: start=0, step=1, limit=5
    $region2: #{tpu_custom_call.1} parent=1 // loop_pre_header
      _
    $region3: #{tpu_custom_call.1} parent=1 // loop_header
      %s17 = sphi 0, %s21
      %p18 = scmp.ge.s32.totalorder %s17, 5
      %s27 = sphi 0, %s29
      %s30 = sphi 0, %s27
      %s31 = sphi 0, %s30
      %s47 = sphi 0, %s31
      %s51 = sphi 0, %s51
      %s53 = sphi 0, %s51
      %s54 = sphi 0, %s53
      %s68 = sphi 0, %s54
      %s72 = sphi 0, %s72
      %s74 = sphi 0, %s72
      %s75 = sphi 0, %s74
      %s89 = sphi 0, %s75
      %s93 = sphi 0, %s93
      %s95 = sphi 0, %s93
      %s96 = sphi 0, %s95
      %s110 = sphi 0, %s96
      %s114 = sphi 0, %s114
      %s116 = sphi 0, %s114
      %s117 = sphi 0, %s116
      %s131 = sphi 0, %s117
      %s135 = sphi 0, %s135
      %s137 = sphi 0, %s135
      %s138 = sphi 0, %s137
      %s152 = sphi 0, %s138
      %s158 = sphi 0, %s160
      %s161 = sphi 0, %s158
      %s162 = sphi 0, %s161
      %s178 = sphi 0, %s162
    $region4: #{tpu_custom_call.1} parent=1 // loop_header_branch
      %20 = sbr.rel (%p18) target = $region8
    $region5: #{tpu_custom_call.1} parent=1 // loop_body
      %s22 = ssub.s32 %s17, 1
      %s23 = ssub.s32 %s17, 2
      %s24 = sadd.s32 %s17, 1
      %s25 = ssub.s32 %s17, %s24
      %p26 = scmp.eq.s32.totalorder %s25, 0
      %s28 = sadd.s32 %s27, 1
      %s29 = scalar_select %p26, %s27, %s28
      %p32 = pneg %p26
      %p33 = scmp.eq.s32.totalorder %s17, 2
      %p34 = por %p32, %p33
      %p35 = scmp.ne.s32.totalorder %s27, %s30
      %p36 = scmp.eq.s32.totalorder %s17, 0
      %p37 = por %p35, %p36
      %p38 = scmp.ne.s32.totalorder %s27, %s30
      %p39 = scmp.eq.s32.totalorder %s22, 2
      %p40 = por %p38, %p39
      %p41 = scmp.ne.s32.totalorder %s30, %s31
      %p42 = scmp.eq.s32.totalorder %s22, 0
      %p43 = por %p41, %p42
      %p44 = scmp.ne.s32.totalorder %s30, %s31
      %p45 = scmp.eq.s32.totalorder %s23, 2
      %p46 = por %p44, %p45
      %p48 = scmp.ne.s32.totalorder %s31, %s47
      %p49 = scmp.eq.s32.totalorder %s23, 0
      %p50 = por %p48, %p49
      %s52 = sadd.s32 %s51, 1
      %p55 = scmp.eq.s32.totalorder %s17, 2
      %p56 = scmp.ne.s32.totalorder %s51, %s53
      %p57 = scmp.eq.s32.totalorder %s17, 0
      %p58 = por %p56, %p57
      %p59 = scmp.ne.s32.totalorder %s51, %s53
      %p60 = scmp.eq.s32.totalorder %s22, 2
      %p61 = por %p59, %p60
      %p62 = scmp.ne.s32.totalorder %s53, %s54
      %p63 = scmp.eq.s32.totalorder %s22, 0
      %p64 = por %p62, %p63
      %p65 = scmp.ne.s32.totalorder %s53, %s54
      %p66 = scmp.eq.s32.totalorder %s23, 2
      %p67 = por %p65, %p66
      %p69 = scmp.ne.s32.totalorder %s54, %s68
      %p70 = scmp.eq.s32.totalorder %s23, 0
      %p71 = por %p69, %p70
      %s73 = sadd.s32 %s72, 1
      %p76 = scmp.eq.s32.totalorder %s17, 2
      %p77 = scmp.ne.s32.totalorder %s72, %s74
      %p78 = scmp.eq.s32.totalorder %s17, 0
      %p79 = por %p77, %p78
      %p80 = scmp.ne.s32.totalorder %s72, %s74
      %p81 = scmp.eq.s32.totalorder %s22, 2
      %p82 = por %p80, %p81
      %p83 = scmp.ne.s32.totalorder %s74, %s75
      %p84 = scmp.eq.s32.totalorder %s22, 0
      %p85 = por %p83, %p84
      %p86 = scmp.ne.s32.totalorder %s74, %s75
      %p87 = scmp.eq.s32.totalorder %s23, 2
      %p88 = por %p86, %p87
      %p90 = scmp.ne.s32.totalorder %s75, %s89
      %p91 = scmp.eq.s32.totalorder %s23, 0
      %p92 = por %p90, %p91
      %s94 = sadd.s32 %s93, 1
      %p97 = scmp.eq.s32.totalorder %s17, 2
      %p98 = scmp.ne.s32.totalorder %s93, %s95
      %p99 = scmp.eq.s32.totalorder %s17, 0
      %p100 = por %p98, %p99
      %p101 = scmp.ne.s32.totalorder %s93, %s95
      %p102 = scmp.eq.s32.totalorder %s22, 2
      %p103 = por %p101, %p102
      %p104 = scmp.ne.s32.totalorder %s95, %s96
      %p105 = scmp.eq.s32.totalorder %s22, 0
      %p106 = por %p104, %p105
      %p107 = scmp.ne.s32.totalorder %s95, %s96
      %p108 = scmp.eq.s32.totalorder %s23, 2
      %p109 = por %p107, %p108
      %p111 = scmp.ne.s32.totalorder %s96, %s110
      %p112 = scmp.eq.s32.totalorder %s23, 0
      %p113 = por %p111, %p112
      %s115 = sadd.s32 %s114, 1
      %p118 = scmp.eq.s32.totalorder %s17, 2
      %p119 = scmp.ne.s32.totalorder %s114, %s116
      %p120 = scmp.eq.s32.totalorder %s17, 0
      %p121 = por %p119, %p120
      %p122 = scmp.ne.s32.totalorder %s114, %s116
      %p123 = scmp.eq.s32.totalorder %s22, 2
      %p124 = por %p122, %p123
      %p125 = scmp.ne.s32.totalorder %s116, %s117
      %p126 = scmp.eq.s32.totalorder %s22, 0
      %p127 = por %p125, %p126
      %p128 = scmp.ne.s32.totalorder %s116, %s117
      %p129 = scmp.eq.s32.totalorder %s23, 2
      %p130 = por %p128, %p129
      %p132 = scmp.ne.s32.totalorder %s117, %s131
      %p133 = scmp.eq.s32.totalorder %s23, 0
      %p134 = por %p132, %p133
      %s136 = sadd.s32 %s135, 1
      %p139 = scmp.eq.s32.totalorder %s17, 2
      %p140 = scmp.ne.s32.totalorder %s135, %s137
      %p141 = scmp.eq.s32.totalorder %s17, 0
      %p142 = por %p140, %p141
      %p143 = scmp.ne.s32.totalorder %s135, %s137
      %p144 = scmp.eq.s32.totalorder %s22, 2
      %p145 = por %p143, %p144
      %p146 = scmp.ne.s32.totalorder %s137, %s138
      %p147 = scmp.eq.s32.totalorder %s22, 0
      %p148 = por %p146, %p147
      %p149 = scmp.ne.s32.totalorder %s137, %s138
      %p150 = scmp.eq.s32.totalorder %s23, 2
      %p151 = por %p149, %p150
      %p153 = scmp.ne.s32.totalorder %s138, %s152
      %p154 = scmp.eq.s32.totalorder %s23, 0
      %p155 = por %p153, %p154
      %s156 = ssub.s32 %s17, %s24
      %p157 = scmp.eq.s32.totalorder %s156, 0
      %s159 = sadd.s32 %s158, 1
      %s160 = scalar_select %p157, %s158, %s159
      %p163 = pneg %p157
      %p164 = scmp.eq.s32.totalorder %s17, 2
      %p165 = por %p163, %p164
      %p166 = scmp.ne.s32.totalorder %s158, %s161
      %p167 = scmp.eq.s32.totalorder %s17, 0
      %p168 = por %p166, %p167
      %p169 = scmp.ne.s32.totalorder %s158, %s161
      %p170 = scmp.eq.s32.totalorder %s22, 2
      %p171 = por %p169, %p170
      %p172 = scmp.ne.s32.totalorder %s161, %s162
      %p173 = scmp.eq.s32.totalorder %s22, 0
      %p174 = por %p172, %p173
      %p175 = scmp.ne.s32.totalorder %s161, %s162
      %p176 = scmp.eq.s32.totalorder %s23, 2
      %p177 = por %p175, %p176
      %p179 = scmp.ne.s32.totalorder %s162, %s178
      %p180 = scmp.eq.s32.totalorder %s23, 0
      %p181 = por %p179, %p180
      %p182 = scmp.le.s32.totalorder 1, %s17
      %p183 = scmp.lt.s32.totalorder %s17, 4
      %p184 = pnand %p182, %p183
      %p185 = pneg %p184
      // Predicated region
      $region9: #{tpu_custom_call.1} parent=5 // pred_check
        _
      $region10: #{tpu_custom_call.1} parent=5 // pred_check_branch
        %187 = sbr.rel (%p184) target = $region12
      $region11: #{tpu_custom_call.1} parent=5 // pred_region
        %s188 = ssub.s32 %s17, 1
        // Predicated region
        $region13: #{tpu_custom_call.1} parent=11 // pred_check
          %p189 = pneg %p64
        $region14: #{tpu_custom_call.1} parent=11 // pred_check_branch
          %191 = sbr.rel (%p189) target = $region16
        $region15: #{tpu_custom_call.1} parent=11 // pred_region
          _
        $region16: #{tpu_custom_call.1} parent=11 // pred_fallthru
          _
        // Predicated region
        $region17: #{tpu_custom_call.1} parent=11 // pred_check
          %p192 = pneg %p85
        $region18: #{tpu_custom_call.1} parent=11 // pred_check_branch
          %194 = sbr.rel (%p192) target = $region20
        $region19: #{tpu_custom_call.1} parent=11 // pred_region
          _
        $region20: #{tpu_custom_call.1} parent=11 // pred_fallthru
          _
        // Predicated region
        $region21: #{tpu_custom_call.1} parent=11 // pred_check
          %p195 = pneg %p106
        $region22: #{tpu_custom_call.1} parent=11 // pred_check_branch
          %197 = sbr.rel (%p195) target = $region24
        $region23: #{tpu_custom_call.1} parent=11 // pred_region
          _
        $region24: #{tpu_custom_call.1} parent=11 // pred_fallthru
          _
        // Predicated region
        $region25: #{tpu_custom_call.1} parent=11 // pred_check
          %p198 = pneg %p127
        $region26: #{tpu_custom_call.1} parent=11 // pred_check_branch
          %200 = sbr.rel (%p198) target = $region28
        $region27: #{tpu_custom_call.1} parent=11 // pred_region
          %s202 = ssub.s32 16, 16
          %203 = vsyncadd [#allocation4], %s202
          %s205 = sshll.u32 %s4, 4
          %s206 = int_to_ptr.vmem [resolvable:$true] %s205
          %208 = dma.vmem_to_smem %s206, 16, [#allocation2], [#allocation4]
        $region28: #{tpu_custom_call.1} parent=11 // pred_fallthru
          _
        // Predicated region
        $region29: #{tpu_custom_call.1} parent=11 // pred_check
          %p209 = pneg %p148
        $region30: #{tpu_custom_call.1} parent=11 // pred_check_branch
          %211 = sbr.rel (%p209) target = $region32
        $region31: #{tpu_custom_call.1} parent=11 // pred_region
          %s213 = ssub.s32 16, 16
          %214 = vsyncadd [#allocation6], %s213
          %s216 = sshll.u32 %s5, 4
          %s217 = int_to_ptr.vmem [resolvable:$true] %s216
          %219 = dma.vmem_to_smem %s217, 16, [#allocation5], [#allocation6]
        $region32: #{tpu_custom_call.1} parent=11 // pred_fallthru
          _
      $region12: #{tpu_custom_call.1} parent=5 // pred_fallthru
        _
      %p220 = scmp.lt.s32.totalorder %s17, 3
      // Predicated region
      $region33: #{tpu_custom_call.1} parent=5 // pred_check
        %p221 = pneg %p220
      $region34: #{tpu_custom_call.1} parent=5 // pred_check_branch
        %223 = sbr.rel (%p221) target = $region36
      $region35: #{tpu_custom_call.1} parent=5 // pred_region
        // Predicated region
        $region37: #{tpu_custom_call.1} parent=35 // pred_check
          %p224 = pneg %p37
        $region38: #{tpu_custom_call.1} parent=35 // pred_check_branch
          %226 = sbr.rel (%p224) target = $region40
        $region39: #{tpu_custom_call.1} parent=35 // pred_region
          %p227 = scmp.lt.s32.totalorder %s17, 2
          %s228 = scalar_select %p227, %s17, 2
          %s229 = smul.addr %s228, 2
          %s230 = scalar_lea.vmem %s0, %s229
        $region40: #{tpu_custom_call.1} parent=35 // pred_fallthru
          _
      $region36: #{tpu_custom_call.1} parent=5 // pred_fallthru
        _
      %p231 = scmp.le.s32.totalorder 1, %s17
      %p232 = scmp.lt.s32.totalorder %s17, 4
      %p233 = pnand %p231, %p232
      %p234 = pneg %p233
      // Predicated region
      $region41: #{tpu_custom_call.1} parent=5 // pred_check
        _
      $region42: #{tpu_custom_call.1} parent=5 // pred_check_branch
        %236 = sbr.rel (%p233) target = $region44
      $region43: #{tpu_custom_call.1} parent=5 // pred_region
        %s237 = ssub.s32 %s17, 1
        // Predicated region
        $region45: #{tpu_custom_call.1} parent=43 // pred_check
          %p238 = pneg %p127
        $region46: #{tpu_custom_call.1} parent=43 // pred_check_branch
          %240 = sbr.rel (%p238) target = $region48
        $region47: #{tpu_custom_call.1} parent=43 // pred_region
          %241 = dma.done [#allocation4], 16
        $region48: #{tpu_custom_call.1} parent=43 // pred_fallthru
          _
        // Predicated region
        $region49: #{tpu_custom_call.1} parent=43 // pred_check
          %p242 = pneg %p148
        $region50: #{tpu_custom_call.1} parent=43 // pred_check_branch
          %244 = sbr.rel (%p242) target = $region52
        $region51: #{tpu_custom_call.1} parent=43 // pred_region
          %245 = dma.done [#allocation6], 16
        $region52: #{tpu_custom_call.1} parent=43 // pred_fallthru
          _
        %246 = sfence
        %p247 = scmp.lt.s32.totalorder %s22, 2
        %s248 = scalar_select %p247, %s22, 2
        %s249 = smul.addr %s248, 2
        %s250 = scalar_lea.vmem %s0, %s249
        %p251 = pneg %p43
        %p252 = pneg %p40
        %p253 = pneg %p64
        %p254 = pneg %p61
        %p255 = pneg %p85
        %p256 = pneg %p82
        %p257 = pneg %p106
        %p258 = pneg %p103
        %p259 = pneg %p127
        %p260 = pneg %p124
        %p261 = pneg %p148
        %p262 = pneg %p145
        %p263 = pneg %p174
        %p264 = pneg %p171
        %s265 = sand.u32 %s161, 1
        %s266 = scalar_lea.sflag [#allocation3], %s265
        %s267 = sand.u32 %s161, 1
        %s268 = smul.addr %s267, 16
        %s269 = scalar_lea.vmem [#allocation7], %s268
        %p270 = scmp.lt.s32.totalorder %s22, 2
        %s271 = scalar_select %p270, %s22, 2
        %s272 = smul.addr %s271, 2
        %s273 = scalar_lea.vmem %s0, %s272
        %v274 = vld [vmem:[%s273] sm:$0x3]
        %v275 = vld [vmem:[%s1] sm:$0xff]
        %v276 = vld [vmem:[%s1 + $0x8] sm:$0xff]
        %v277 = vld [vmem:[%s1 + $0x10] sm:$0xff]
        %v278 = vld [vmem:[%s1 + $0x18] sm:$0xff]
        %280 = vset.pattern.permute.xlu0 0
        %281 = vperm.xlu0 %280, %v275
        %v282 = vpop.permute.xlu0 %281
        %285 = vset.pattern.permute.xlu0 0
        %286 = vperm.xlu0 %285, %v276
        %v287 = vpop.permute.xlu0 %286
        %290 = vset.pattern.permute.xlu0 0
        %291 = vperm.xlu0 %290, %v277
        %v292 = vpop.permute.xlu0 %291
        %295 = vset.pattern.permute.xlu0 0
        %296 = vperm.xlu0 %295, %v278
        %v297 = vpop.permute.xlu0 %296
        %v299 = vlaneseq
        %v300 = vshrl.u32 %v299, 7
        %v301 = vsub.s32 0, %v300
        %v302 = vrot.slane %v274, %v301
        %v303 = vmul.f32 %v282, %v302
        %v304 = vmul.f32 %v287, %v302
        %v305 = vmul.f32 %v292, %v302
        %v306 = vmul.f32 %v297, %v302
        %307 = vset.pattern.permute.xlu0 1
        %308 = vperm.xlu0 %307, %v275
        %v309 = vpop.permute.xlu0 %308
        %311 = vset.pattern.permute.xlu0 1
        %312 = vperm.xlu0 %311, %v276
        %v313 = vpop.permute.xlu0 %312
        %315 = vset.pattern.permute.xlu0 1
        %316 = vperm.xlu0 %315, %v277
        %v317 = vpop.permute.xlu0 %316
        %319 = vset.pattern.permute.xlu0 1
        %320 = vperm.xlu0 %319, %v278
        %v321 = vpop.permute.xlu0 %320
        %v323 = vlaneseq
        %v324 = vshrl.u32 %v323, 7
        %v325 = vsub.s32 1, %v324
        %v326 = vrot.slane %v274, %v325
        %v327 = vmul.f32 %v309, %v326
        %v328 = vmul.f32 %v313, %v326
        %v329 = vmul.f32 %v317, %v326
        %v330 = vmul.f32 %v321, %v326
        %v331 = vadd.f32 %v303, %v327
        %v332 = vadd.f32 %v304, %v328
        %v333 = vadd.f32 %v305, %v329
        %v334 = vadd.f32 %v306, %v330
        %v335 = vld [vmem:[%s2] sm:$0xff]
        %v336 = vld [vmem:[%s2 + $0x8] sm:$0xff]
        %v337 = vld [vmem:[%s2 + $0x10] sm:$0xff]
        %v338 = vld [vmem:[%s2 + $0x18] sm:$0xff]
        %340 = vset.pattern.permute.xlu0 0
        %341 = vperm.xlu0 %340, %v335
        %v342 = vpop.permute.xlu0 %341
        %345 = vset.pattern.permute.xlu0 0
        %346 = vperm.xlu0 %345, %v336
        %v347 = vpop.permute.xlu0 %346
        %350 = vset.pattern.permute.xlu0 0
        %351 = vperm.xlu0 %350, %v337
        %v352 = vpop.permute.xlu0 %351
        %355 = vset.pattern.permute.xlu0 0
        %356 = vperm.xlu0 %355, %v338
        %v357 = vpop.permute.xlu0 %356
        %v359 = vadd.f32 %v331, %v342
        %v360 = vadd.f32 %v332, %v347
        %v361 = vadd.f32 %v333, %v352
        %v362 = vadd.f32 %v334, %v357
        %v363 = vtanh.pop %v359
        %v364 = vtanh.pop %v360
        %v365 = vtanh.pop %v361
        %v366 = vtanh.pop %v362
        %v367 = vld [vmem:[%s3] sm:$0xff]
        %vm368 = vcmask 261120
        %v370 = vsel %vm368, %v367, 0
        %372 = vmatprep.subr.mxu0 0.0
        %373 = vmatpush1.msra.mxu0 0.0
        %374 = vmatprep.subr.mxu0 0.0
        %375 = vmatpush1.msra.mxu0 0.0
        %376 = vmatprep.subr.mxu0 0.0
        %377 = vmatpush1.msra.mxu0 0.0
        %378 = vmatprep.subr.mxu0 0.0
        %379 = vmatpush1.msra.mxu0 0.0
        %380 = vmatprep.subr.mxu0 0.0
        %381 = vmatpush1.msra.mxu0 0.0
        %382 = vmatprep.subr.mxu0 0.0
        %383 = vmatpush1.msra.mxu0 0.0
        %384 = vmatprep.subr.mxu0 0.0
        %385 = vmatpush1.msra.mxu0 0.0
        %386 = vmatprep.subr.mxu0 0.0
        %387 = vmatpush1.msra.mxu0 0.0
        %388 = vmatprep.subr.mxu0 0.0
        %389 = vmatpush1.msra.mxu0 0.0
        %390 = vmatprep.subr.mxu0 0.0
        %391 = vmatpush1.msra.mxu0 0.0
        %392 = vmatprep.subr.mxu0 0.0
        %393 = vmatpush1.msra.mxu0 0.0
        %394 = vmatprep.subr.mxu0 0.0
        %395 = vmatpush1.msra.mxu0 0.0
        %396 = vmatprep.subr.mxu0 0.0
        %397 = vmatpush1.msra.mxu0 %v366
        %398 = vmatprep.subr.mxu0 0.0
        %399 = vmatpush1.msra.mxu0 %v365
        %400 = vmatprep.subr.mxu0 0.0
        %401 = vmatpush1.msra.mxu0 %v364
        %402 = vmatprep.subr.mxu0 0.0
        %403 = vmatpush1.msra.mxu0 %v363
        %404 = vmatprep.subr.mxu0 0.0
        %405 = vmatpush2.msra.mxu0 0.0
        %406 = vmatprep.subr.mxu0 0.0
        %407 = vmatpush2.msra.mxu0 0.0
        %408 = vmatprep.subr.mxu0 0.0
        %409 = vmatpush2.msra.mxu0 0.0
        %410 = vmatprep.subr.mxu0 0.0
        %411 = vmatpush2.msra.mxu0 0.0
        %412 = vmatprep.subr.mxu0 0.0
        %413 = vmatpush2.msra.mxu0 0.0
        %414 = vmatprep.subr.mxu0 0.0
        %415 = vmatpush2.msra.mxu0 0.0
        %416 = vmatprep.subr.mxu0 0.0
        %417 = vmatpush2.msra.mxu0 0.0
        %418 = vmatprep.subr.mxu0 0.0
        %419 = vmatpush2.msra.mxu0 0.0
        %420 = vmatprep.subr.mxu0 0.0
        %421 = vmatpush2.msra.mxu0 0.0
        %422 = vmatprep.subr.mxu0 0.0
        %423 = vmatpush2.msra.mxu0 0.0
        %424 = vmatprep.subr.mxu0 0.0
        %425 = vmatpush2.msra.mxu0 0.0
        %426 = vmatprep.subr.mxu0 0.0
        %427 = vmatpush2.msra.mxu0 0.0
        %428 = vmatprep.subr.mxu0 0.0
        %429 = vmatpush2.msra.mxu0 0.0
        %430 = vmatprep.subr.mxu0 0.0
        %431 = vmatpush2.msra.mxu0 0.0
        %432 = vmatprep.subr.mxu0 0.0
        %433 = vmatpush2.msra.mxu0 0.0
        %434 = vmatprep.subr.mxu0 0.0
        %435 = vmatpush2.msra.mxu0 0.0
        %436 = vmatprep.mubr.f32.mxu0 0.0
        %437 = vmatmul.mubr.f32.gmra.mxu0 %v370
        %v438 = vpop.f32.mrf.mxu0
        %v439 = vadd.f32 0.0, %v438
        %v440 = vpop.f32.mrf.mxu0
        %441 = vdwg.mxu0
        %s442 = sld [smem:[#allocation5]]
        %v443 = vstv %s442
        %s444 = sld [smem:[#allocation5 + $0x1]]
        %v445 = vstv %s444
        %s446 = sld [smem:[#allocation2]]
        %v447 = vstv %s446
        %v448 = vmul.f32 %v447, %v439
        %s449 = sld [smem:[#allocation2 + $0x2]]
        %v450 = vstv %s449
        %v451 = vmul.f32 %v450, %v439
        %v453 = vrot.slane %v451, 2
        %v455 = vadd.f32 %v448, %v453
        %s456 = sld [smem:[#allocation5 + $0x3]]
        %v457 = vstv %s456
        %s458 = sld [smem:[#allocation2 + $0x1]]
        %v459 = vstv %s458
        %v460 = vmul.f32 %v459, %v439
        %s461 = sld [smem:[#allocation2 + $0x3]]
        %v462 = vstv %s461
        %v463 = vmul.f32 %v462, %v439
        %v465 = vrot.slane %v463, 2
        %v467 = vadd.f32 %v460, %v465
        %v468 = vmul.f32 %v439, %v439
        %v470 = vrot.slane %v468, 2
        %v472 = vadd.f32 %v468, %v470
        %v473 = vrot.slane %v468, 4
        %v475 = vadd.f32 %v472, %v473
        %v476 = vrot.slane %v468, 6
        %v478 = vadd.f32 %v475, %v476
        %v479 = vadd.f32 %v478, 0.1
        %v481 = vrot.slane %v439, 1
        %v483 = vmul.f32 %v439, %v481
        %v485 = vrot.slane %v483, 2
        %v487 = vadd.f32 %v483, %v485
        %v488 = vrot.slane %v483, 4
        %v490 = vadd.f32 %v487, %v488
        %v491 = vrot.slane %v483, 6
        %v493 = vadd.f32 %v490, %v491
        %v495 = vrot.slane %v455, 6
        %v498 = vrot.slane %v467, 2
        %v500 = vrot.slane %v467, 7
        %v503 = vrot.slane %v479, 6
        %v506 = vrot.slane %v493, 5
        %v508 = vrot.slane %v455, 5
        %v510 = vrot.slane %v467, 4
        %v512 = vrot.slane %v493, 2
        %v514 = vrot.slane %v479, 2
        %vm516 = vcmask 1040384
        %v517 = vsel %vm516, %v443, %v445
        %vm518 = vcmask 1041408
        %v519 = vsel %vm518, %v517, %v495
        %vm520 = vcmask 1042432
        %v521 = vsel %vm520, %v519, %v495
        %vm522 = vcmask 1043456
        %v523 = vsel %vm522, %v521, %v445
        %vm524 = vcmask 1044480
        %v525 = vsel %vm524, %v523, %v457
        %vm526 = vcmask 1045504
        %v527 = vsel %vm526, %v525, %v498
        %vm528 = vcmask 1046528
        %v529 = vsel %vm528, %v527, %v498
        %v530 = vsel %vm516, %v455, %v500
        %v531 = vsel %vm518, %v530, %v503
        %v532 = vsel %vm520, %v531, %v506
        %v533 = vsel %vm522, %v532, %v508
        %v534 = vsel %vm524, %v533, %v510
        %v535 = vsel %vm526, %v534, %v512
        %v536 = vsel %vm528, %v535, %v514
        %537 = vst [vmem:[%s269] sm:$0xff] %v529
        %538 = vst [vmem:[%s269 + $0x8] sm:$0xff] %v536
        %s539 = sand.u32 %s161, 1
        %s540 = scalar_lea.sflag [#allocation3], %s539
        %s541 = sand.u32 %s161, 1
        %s542 = smul.addr %s541, 16
        %s543 = scalar_lea.vmem [#allocation7], %s542
        // Predicated region
        $region53: #{tpu_custom_call.1} parent=43 // pred_check
          %p544 = pneg %p171
        $region54: #{tpu_custom_call.1} parent=43 // pred_check_branch
          %546 = sbr.rel (%p544) target = $region56
        $region55: #{tpu_custom_call.1} parent=43 // pred_region
          %s548 = ssub.s32 256, 256
          %549 = vsyncadd %s540, %s548
          %s550 = smul.addr %s22, 128
          %s551 = scalar_lea.hbm %s6, %s550
          %s552 = sshll.u32 %s543, 4
          %s553 = int_to_ptr.vmem [resolvable:$true] %s552
          %558 = dma.vmem_to_hbm [thread:$0]  %s553, 256, %s551, %s540, 128, 384, 8
        $region56: #{tpu_custom_call.1} parent=43 // pred_fallthru
          _
      $region44: #{tpu_custom_call.1} parent=5 // pred_fallthru
        _
      %p559 = scmp.le.s32.totalorder 2, %s17
      // Predicated region
      $region57: #{tpu_custom_call.1} parent=5 // pred_check
        %p560 = pneg %p559
      $region58: #{tpu_custom_call.1} parent=5 // pred_check_branch
        %562 = sbr.rel (%p560) target = $region60
      $region59: #{tpu_custom_call.1} parent=5 // pred_region
        %s563 = ssub.s32 %s17, 2
        // Predicated region
        $region61: #{tpu_custom_call.1} parent=59 // pred_check
          %p564 = pneg %p177
        $region62: #{tpu_custom_call.1} parent=59 // pred_check_branch
          %566 = sbr.rel (%p564) target = $region64
        $region63: #{tpu_custom_call.1} parent=59 // pred_region
          %s567 = sand.u32 %s162, 1
          %s568 = scalar_lea.sflag [#allocation3], %s567
          %s569 = sand.u32 %s162, 1
          %s570 = smul.addr %s569, 16
          %s571 = scalar_lea.vmem [#allocation7], %s570
          %572 = dma.done %s568, 256
        $region64: #{tpu_custom_call.1} parent=59 // pred_fallthru
          _
      $region60: #{tpu_custom_call.1} parent=5 // pred_fallthru
        _
    $region6: #{tpu_custom_call.1} parent=1 // loop_footer
      %s21 = sadd.s32 1, %s17
    $region7: #{tpu_custom_call.1} parent=1 // loop_footer_branch
      %16 = sbr.rel target = $region3
    $region8: #{tpu_custom_call.1} parent=1 // loop_exit
      _
    %573 = vsyncpa [#allocation3], 1
    %s574 = scalar_lea.sflag [#allocation3], 1
    %575 = vsyncpa %s574, 1
    %576 = vsyncpa [#allocation4], 1
    %s577 = scalar_lea.sflag [#allocation4], 1
    %578 = vsyncpa %s577, 1
    %579 = vsyncpa [#allocation6], 1

</llo_original>
